<compile_context>
chip_gen: v7x
topology: tpu7x:2x2x1
jax: 0.10.0
libtpu: 0.0.40
codegen_flags: <defaults>
</compile_context>

<pallas_src>
import numpy as np
import jax
import jax.numpy as jnp
from jax.experimental import pallas as pl
from jax.experimental.pallas import tpu as pltpu


# --------------------------------------------------------------------------
# Zero-copy aliased identity (the base-class forward).
# --------------------------------------------------------------------------
def _identity_alias_kernel(x_ref, o_ref):
    # x_ref / o_ref are raw HBM refs (memory_space=pl.ANY) and, via
    # input_output_aliases={0: 0}, refer to the SAME buffer.  The base-class
    # forward is an identity, so no bytes need to move.  touch() installs a
    # read/write dependency on the output ref so the call is neither elided
    # nor reordered around later consumers of the result.
    pltpu.touch(o_ref)


def _identity_alias_call(x: jax.Array) -> jax.Array:
    return pl.pallas_call(
        _identity_alias_kernel,
        out_shape=jax.ShapeDtypeStruct(x.shape, x.dtype),
        in_specs=[pl.BlockSpec(memory_space=pl.ANY)],
        out_specs=pl.BlockSpec(memory_space=pl.ANY),
        input_output_aliases={0: 0},
        compiler_params=pltpu.CompilerParams(has_side_effects=True),
    )(x)


# --------------------------------------------------------------------------
# Materializing tiled copy (template kept for subclasses that need a fresh
# output buffer; not used by the default identity path).
# --------------------------------------------------------------------------
def _copy_kernel(x_ref, o_ref):
    o_ref[...] = x_ref[...]


# Lane-dense last-dim candidates (multiples of 128, largest first).
_LANE_CANDIDATES = (1024, 512, 256, 128)
# Below this total size, a single whole-array VMEM block is simplest/safe
# (exempt from the (8,128) divisibility rule, trivially fits VMEM).
_SMALL_BYTES = 64 << 10


def _target_block_bytes() -> int:
    """Per-buffer VMEM block target, generation-aware.

    v5e scoped-VMEM default is 16 MiB -> keep 2 bufs x (in+out) x block small.
    v6e/v7x (32 MiB scoped default, 1.3-3.2 TB/s HBM) -> 4 MiB blocks keep the
    ~0.35 us per-grid-step overhead under ~10% of the DMA time while the total
    pipelined footprint (4 x 4 MiB) stays well inside scoped VMEM.
    """
    try:
        kind = jax.devices()[0].device_kind.lower()
    except Exception:
        return 2 << 20
    if "v6" in kind or "7" in kind:
        return 4 << 20
    return 2 << 20  # v5e / unknown: conservative


def _tiled_identity_copy(x: jax.Array) -> jax.Array:
    """Identity copy into a fresh buffer via a lane-dense tiled Pallas kernel."""
    orig_shape = x.shape
    dtype = x.dtype
    itemsize = jnp.dtype(dtype).itemsize
    n = int(np.prod(orig_shape)) if orig_shape else 1
    nbytes = n * itemsize

    if n == 0:
        return x

    if nbytes <= _SMALL_BYTES:
        # Tiny input: whole-array single block (block == full array dims).
        return pl.pallas_call(
            _copy_kernel,
            out_shape=jax.ShapeDtypeStruct(orig_shape, dtype),
        )(x)

    flat = x.reshape(-1)
    cols = next((c for c in _LANE_CANDIDATES if n % c == 0), None)
    if cols is None:
        # TODO(synk): non-128-divisible element counts -- pad the flat vector
        # to a lane multiple (costs one extra HBM copy for the pad) instead of
        # degenerating into a whole-array VMEM block with masked stores.
        cols = 128
        pad = (-n) % cols
        flat = jnp.pad(flat, (0, pad))
    rows = flat.shape[0] // cols

    target = _target_block_bytes()
    br = max(8, (target // (cols * itemsize)) // 8 * 8)
    if rows >= 16:
        # Keep >= 2 grid steps when there is enough data so the "parallel"
        # axis can actually shard across both TensorCores on v7x.
        br = min(br, ((rows + 15) // 16) * 8)
    br = min(br, ((rows + 7) // 8) * 8)
    grid = (pl.cdiv(rows, br),)

    x2 = flat.reshape(rows, cols)
    y2 = pl.pallas_call(
        _copy_kernel,
        out_shape=jax.ShapeDtypeStruct((rows, cols), dtype),
        grid_spec=pltpu.PrefetchScalarGridSpec(
            num_scalar_prefetch=0,
            grid=grid,
            in_specs=[pl.BlockSpec((br, cols), lambda i: (i, 0))],
            out_specs=pl.BlockSpec((br, cols), lambda i: (i, 0)),
        ),
        compiler_params=pltpu.CompilerParams(
            dimension_semantics=("parallel",),
        ),
    )(x2)

    return y2.reshape(-1)[:n].reshape(orig_shape)


# --------------------------------------------------------------------------
# Public wrapper.
# --------------------------------------------------------------------------
# jit so the reshapes are metadata-only and, with donation, the aliased output
# truly reuses the input buffer (no defensive copy, no dispatch overhead).
_forward_alias_donated = jax.jit(_identity_alias_call, donate_argnums=0)
_forward_alias_keep = jax.jit(_identity_alias_call)
_forward_copy = jax.jit(_tiled_identity_copy)


def torch_model_forward(x: jax.Array, *, donate: bool = True,
                        materialize: bool = False) -> jax.Array:
    """Pallas equivalent of the abstract `TorchModel.forward` (identity).

    Default path (materialize=False, donate=True): the output aliases the
    input HBM buffer and NO data is streamed -- do not reuse `x` afterwards.
    Pass donate=False if `x` must stay live (XLA then inserts one copy), or
    materialize=True to force a fresh output buffer via the tiled copy kernel.
    """
    if not materialize:
        try:
            return (_forward_alias_donated if donate else _forward_alias_keep)(x)
        except Exception:
            # TODO(synk): zero-copy ANY-space alias path unsupported on this
            # jax/libtpu build -> fall back to the tiled materializing copy.
            pass
    return _forward_copy(x)


if __name__ == "__main__":
    # TorchModel.__init__ seeds numpy / torch RNGs (seed=0) but creates no
    # weights, so the only deterministic state needed is the example input.
    key = jax.random.PRNGKey(0)
    k0, k1 = jax.random.split(key)
    x = jax.random.normal(k0, (2, 4, 16, 16), dtype=jnp.float32)      # NCHW
    x_big = jax.random.normal(k1, (4, 8, 64, 128), dtype=jnp.float32)  # NCHW

    # Host copies for the correctness checks (device buffers may be donated /
    # aliased to the outputs).
    x_host = np.asarray(x)
    x_big_host = np.asarray(x_big)

    # 1) Materializing copy template (small whole-array block + tiled cdiv
    #    grid path), exercised for correctness.
    y_copy = jax.block_until_ready(torch_model_forward(x, materialize=True))
    assert y_copy.shape == x_host.shape and y_copy.dtype == x_host.dtype
    assert np.array_equal(np.asarray(y_copy), x_host)

    y_big_copy = jax.block_until_ready(
        torch_model_forward(x_big, materialize=True))
    assert y_big_copy.shape == x_big_host.shape
    assert np.array_equal(np.asarray(y_big_copy), x_big_host)

    # 2) Zero-copy aliased base-class forward (donates x -- x is not used
    #    again after this call).
    y = jax.block_until_ready(torch_model_forward(x))
    assert y.shape == x_host.shape and y.dtype == x_host.dtype
    assert np.array_equal(np.asarray(y), x_host)

    print("KERNEL_OK")
</pallas_src>

<mosaic_0001>
module attributes {stable_mosaic.version = 11 : i64} {
  func.func @_copy_kernel(%arg0: memref<2x4x16x16xf32, #tpu.memory_space<vmem>>, %arg1: memref<2x4x16x16xf32, #tpu.memory_space<vmem>>) attributes {dimension_semantics = [], scalar_prefetch = 0 : i64, scratch_operands = 0 : i64, tpu.core_type = #tpu.core_type<tc>} {
    %c0 = arith.constant 0 : index
    %c0_0 = arith.constant 0 : index
    %c0_1 = arith.constant 0 : index
    %c0_2 = arith.constant 0 : index
    %0 = vector.load %arg0[%c0, %c0_0, %c0_1, %c0_2] : memref<2x4x16x16xf32, #tpu.memory_space<vmem>>, vector<2x4x16x16xf32>
    %c0_3 = arith.constant 0 : index
    %c0_4 = arith.constant 0 : index
    %c0_5 = arith.constant 0 : index
    %c0_6 = arith.constant 0 : index
    %1 = vector.load %arg1[%c0_3, %c0_4, %c0_5, %c0_6] : memref<2x4x16x16xf32, #tpu.memory_space<vmem>>, vector<2x4x16x16xf32>
    tpu.vector_store %arg1[%c0_3, %c0_4, %c0_5, %c0_6], %0 {strides = array<i32>} : memref<2x4x16x16xf32, #tpu.memory_space<vmem>>, vector<2x4x16x16xf32>,
    return
  }
}

</mosaic_0001>

<llo_original>
// kernel: _tiled_identity_copy.1
$region0: #{_tiled_identity_copy.1}
  #allocation0 [shape = 'u32[]', space=smem, size = 0x4, offset = 0x4, fixed_abs, tag = 'smem constant byte address 0x4 - core index']
  #allocation1 [shape = 'u32[144,128]{1,0:T(1,128)}', space=vmem, size = 0x12000, scoped, tag = 'internal scratch']
  %s0 = inlined_call_operand.hbm [shape: f32[2,4,16,16], index: 0, kind: input, shape index: {}]
  %s1 = inlined_call_operand.hbm [shape: f32[2,4,16,16], index: 1, kind: output, shape index: {}]
  %s2 = sld [smem:[#allocation0]]
  $region18: #{_tiled_identity_copy.1} parent=0
    _
  %s4 = ssub.s32 1, %s2
  %s5 = scalar_select 0, %s4, %s2
  $region1: #{_tiled_identity_copy.1} parent=0
    #allocation2 [shape = 'u8[65536]{0}', space=vmem, size = 0x10000, scoped, tag = 'input window, operand 0, single buffered']
    #allocation3 [shape = 's32[1]{0}', space=sflag, size = 0x4, scoped, tag = 'scoped memory for _tiled_identity_copy.1']
    #allocation4 [shape = 's32[1]{0}', space=sflag, size = 0x4, scoped, tag = 'scoped memory for _tiled_identity_copy.1']
    #allocation5 [shape = 'u8[65536]{0}', space=vmem, size = 0x10000, scoped, tag = 'output window, operand 0, single buffered']
    %6 = vsyncpa [#allocation3], 0
    %7 = vsyncpa [#allocation4], 0
    // Predicated region
    $region2: #{_tiled_identity_copy.1} parent=1 // pred_check
      _
    $region3: #{_tiled_identity_copy.1} parent=1 // pred_check_branch
      %9 = sbr.rel (0) target = $region5
    $region4: #{_tiled_identity_copy.1} parent=1 // pred_region
      %s11 = ssub.s32 2048, 2048
      %12 = vsyncadd [#allocation3], %s11
      %s13 = sshll.u32 [#allocation2], 4
      %s14 = int_to_ptr.vmem [resolvable:$true] %s13
      %19 = dma.hbm_to_vmem [thread:$0]  %s0, 2048, %s14, [#allocation3], 128, 128, 8
    $region5: #{_tiled_identity_copy.1} parent=1 // pred_fallthru
      _
    // Predicated region
    $region6: #{_tiled_identity_copy.1} parent=1 // pred_check
      _
    $region7: #{_tiled_identity_copy.1} parent=1 // pred_check_branch
      %21 = sbr.rel (0) target = $region9
    $region8: #{_tiled_identity_copy.1} parent=1 // pred_region
      %22 = dma.done [#allocation3], 2048
    $region9: #{_tiled_identity_copy.1} parent=1 // pred_fallthru
      _
    %v23 = vld [vmem:[#allocation2] sm:$0xff]
    %v24 = vld [vmem:[#allocation2 + $0x8] sm:$0xff]
    %v25 = vld [vmem:[#allocation2 + $0x10] sm:$0xff]
    %v26 = vld [vmem:[#allocation2 + $0x18] sm:$0xff]
    %v27 = vld [vmem:[#allocation2 + $0x20] sm:$0xff]
    %v28 = vld [vmem:[#allocation2 + $0x28] sm:$0xff]
    %v29 = vld [vmem:[#allocation2 + $0x30] sm:$0xff]
    %v30 = vld [vmem:[#allocation2 + $0x38] sm:$0xff]
    %v31 = vld [vmem:[#allocation2 + $0x40] sm:$0xff]
    %v32 = vld [vmem:[#allocation2 + $0x48] sm:$0xff]
    %v33 = vld [vmem:[#allocation2 + $0x50] sm:$0xff]
    %v34 = vld [vmem:[#allocation2 + $0x58] sm:$0xff]
    %v35 = vld [vmem:[#allocation2 + $0x60] sm:$0xff]
    %v36 = vld [vmem:[#allocation2 + $0x68] sm:$0xff]
    %v37 = vld [vmem:[#allocation2 + $0x70] sm:$0xff]
    %v38 = vld [vmem:[#allocation2 + $0x78] sm:$0xff]
    %vm39 = vcmask 130048
    %40 = vst.msk [vmem:[#allocation5] sm:$0xff] %vm39, %v23
    %41 = vst.msk [vmem:[#allocation5 + $0x8] sm:$0xff] %vm39, %v24
    %42 = vst.msk [vmem:[#allocation5 + $0x10] sm:$0xff] %vm39, %v25
    %43 = vst.msk [vmem:[#allocation5 + $0x18] sm:$0xff] %vm39, %v26
    %44 = vst.msk [vmem:[#allocation5 + $0x20] sm:$0xff] %vm39, %v27
    %45 = vst.msk [vmem:[#allocation5 + $0x28] sm:$0xff] %vm39, %v28
    %46 = vst.msk [vmem:[#allocation5 + $0x30] sm:$0xff] %vm39, %v29
    %47 = vst.msk [vmem:[#allocation5 + $0x38] sm:$0xff] %vm39, %v30
    %48 = vst.msk [vmem:[#allocation5 + $0x40] sm:$0xff] %vm39, %v31
    %49 = vst.msk [vmem:[#allocation5 + $0x48] sm:$0xff] %vm39, %v32
    %50 = vst.msk [vmem:[#allocation5 + $0x50] sm:$0xff] %vm39, %v33
    %51 = vst.msk [vmem:[#allocation5 + $0x58] sm:$0xff] %vm39, %v34
    %52 = vst.msk [vmem:[#allocation5 + $0x60] sm:$0xff] %vm39, %v35
    %53 = vst.msk [vmem:[#allocation5 + $0x68] sm:$0xff] %vm39, %v36
    %54 = vst.msk [vmem:[#allocation5 + $0x70] sm:$0xff] %vm39, %v37
    %55 = vst.msk [vmem:[#allocation5 + $0x78] sm:$0xff] %vm39, %v38
    // Predicated region
    $region10: #{_tiled_identity_copy.1} parent=1 // pred_check
      _
    $region11: #{_tiled_identity_copy.1} parent=1 // pred_check_branch
      %57 = sbr.rel (0) target = $region13
    $region12: #{_tiled_identity_copy.1} parent=1 // pred_region
      %s59 = ssub.s32 2048, 2048
      %60 = vsyncadd [#allocation4], %s59
      %s61 = sshll.u32 [#allocation5], 4
      %s62 = int_to_ptr.vmem [resolvable:$true] %s61
      %67 = dma.vmem_to_hbm [thread:$0]  %s62, 2048, %s1, [#allocation4], 128, 128, 8
    $region13: #{_tiled_identity_copy.1} parent=1 // pred_fallthru
      _
    // Predicated region
    $region14: #{_tiled_identity_copy.1} parent=1 // pred_check
      _
    $region15: #{_tiled_identity_copy.1} parent=1 // pred_check_branch
      %69 = sbr.rel (0) target = $region17
    $region16: #{_tiled_identity_copy.1} parent=1 // pred_region
      %70 = dma.done [#allocation4], 2048
    $region17: #{_tiled_identity_copy.1} parent=1 // pred_fallthru
      _
    %71 = vsyncpa [#allocation3], 1
    %72 = vsyncpa [#allocation4], 1

</llo_original>
